<compile_context>
chip_gen: v5e
topology: v5e:2x2
jax: 0.10.0
libtpu: 0.0.40
codegen_flags: <defaults>
</compile_context>

<pallas_src>
import functools

import jax
import jax.numpy as jnp
from jax.experimental import pallas as pl
from jax.experimental.pallas import tpu as pltpu


def _round_up(x, m):
    return ((x + m - 1) // m) * m


# ---------------------------------------------------------------------------
# Pallas kernels
# ---------------------------------------------------------------------------

def _conv_bn_act_kernel(x_ref, w_ref, b_ref, *rest, use_res, use_relu,
                        with_mean):
    """Fused im2col-matmul (MXU, bf16 in / f32 acc) + folded-BN bias +
    optional residual + ReLU + optional fused channel-mean output."""
    if use_res:
        r_ref, rest = rest[0], rest[1:]
    o_ref = rest[0]
    acc = jnp.dot(x_ref[...], w_ref[...], preferred_element_type=jnp.float32)
    acc = acc + b_ref[...]
    if use_res:
        acc = acc + r_ref[...]
    if use_relu:
        acc = jnp.maximum(acc, 0.0)
    o_ref[...] = acc
    if with_mean:
        rest[1][...] = jnp.mean(acc, axis=1, keepdims=True)


def conv_bn_act(patches, weight, bias, residual=None, relu=True,
                with_mean=False):
    """patches: [M, K] bf16 im2col rows, weight: [K, N] bf16 (BN scale folded),
    bias: [1, N] f32.  Optional residual [M, N] f32.  Returns f32 [M, N]
    (+ [M, 1] channel mean when with_mean)."""
    M, K = patches.shape
    N = weight.shape[1]
    tm = _round_up(M, 16) if M <= 1024 else 512
    Mp = _round_up(M, tm)
    if Mp != M:
        patches = jnp.pad(patches, ((0, Mp - M), (0, 0)))
    use_res = residual is not None

    inputs = [patches, weight, bias]
    in_specs = [pl.BlockSpec((tm, K), lambda i: (i, 0)),
                pl.BlockSpec((K, N), lambda i: (0, 0)),
                pl.BlockSpec((1, N), lambda i: (0, 0))]
    if use_res:
        res = residual.astype(jnp.float32)
        if Mp != M:
            res = jnp.pad(res, ((0, Mp - M), (0, 0)))
        inputs.append(res)
        in_specs.append(pl.BlockSpec((tm, N), lambda i: (i, 0)))

    out_shape = jax.ShapeDtypeStruct((Mp, N), jnp.float32)
    out_specs = pl.BlockSpec((tm, N), lambda i: (i, 0))
    if with_mean:
        out_shape = (out_shape, jax.ShapeDtypeStruct((Mp, 1), jnp.float32))
        out_specs = (out_specs, pl.BlockSpec((tm, 1), lambda i: (i, 0)))

    kern = functools.partial(_conv_bn_act_kernel, use_res=use_res,
                             use_relu=relu, with_mean=with_mean)
    out = pl.pallas_call(
        kern,
        out_shape=out_shape,
        grid=(Mp // tm,),
        in_specs=in_specs,
        out_specs=out_specs,
        compiler_params=pltpu.CompilerParams(
            dimension_semantics=("parallel",)),
    )(*inputs)
    if with_mean:
        return out[0][:M], out[1][:M]
    return out[:M]


def _maxpool_kernel(p_ref, o_ref):
    m = p_ref[0]
    for t in range(1, 9):
        m = jnp.maximum(m, p_ref[t])
    o_ref[...] = m


def maxpool_3x3_s2_p1(x):
    """Matches nn.MaxPool2d(kernel_size=3, stride=2, padding=1). x: NHWC f32.
    Tiled over output rows (review: no single whole-array VMEM block)."""
    B, H, W, C = x.shape
    oh = (H + 2 - 3) // 2 + 1
    ow = (W + 2 - 3) // 2 + 1
    xp = jnp.pad(x, ((0, 0), (1, 1), (1, 1), (0, 0)),
                 constant_values=-jnp.inf)
    # TODO(synk): the 9x tap stack is still materialized by XLA; a halo/Element
    # BlockSpec that reads the raw padded map would remove this HBM blow-up.
    taps = [xp[:, i:i + 2 * (oh - 1) + 1:2, j:j + 2 * (ow - 1) + 1:2, :]
            for i in range(3) for j in range(3)]
    M = B * oh * ow
    tm = _round_up(M, 16) if M <= 1024 else 512
    Mp = _round_up(M, tm)
    stk = jnp.stack(taps, 0).reshape(9, M, C)
    if Mp != M:
        stk = jnp.pad(stk, ((0, 0), (0, Mp - M), (0, 0)),
                      constant_values=-jnp.inf)
    out = pl.pallas_call(
        _maxpool_kernel,
        out_shape=jax.ShapeDtypeStruct((Mp, C), jnp.float32),
        grid=(Mp // tm,),
        in_specs=[pl.BlockSpec((9, tm, C), lambda i: (0, i, 0))],
        out_specs=pl.BlockSpec((tm, C), lambda i: (i, 0)),
        compiler_params=pltpu.CompilerParams(
            dimension_semantics=("parallel",)),
    )(stk)
    return out[:M].reshape(B, oh, ow, C)


def _bilinear_warp_kernel(crd_ref, val_ref, o_ref, *, w, h):
    """4-tap bilinear interpolation (grid_sample bilinear / zeros padding /
    align_corners=True) of the channel-mean map; lane-dense [tr, 128] tiles."""
    ix = crd_ref[0]
    iy = crd_ref[1]
    x0 = jnp.floor(ix)
    y0 = jnp.floor(iy)
    fx = ix - x0
    fy = iy - y0

    def inb(xc, yc):
        return ((xc >= 0.0) & (xc <= w - 1.0) &
                (yc >= 0.0) & (yc <= h - 1.0)).astype(jnp.float32)

    w00 = (1.0 - fx) * (1.0 - fy) * inb(x0, y0)
    w01 = fx * (1.0 - fy) * inb(x0 + 1.0, y0)
    w10 = (1.0 - fx) * fy * inb(x0, y0 + 1.0)
    w11 = fx * fy * inb(x0 + 1.0, y0 + 1.0)
    o_ref[...] = (w00 * val_ref[0] + w01 * val_ref[1] +
                  w10 * val_ref[2] + w11 * val_ref[3])


def bilinear_warp_means(mean_map, ix, iy, h, w):
    """mean_map: [B, F, hw] channel-mean of lookup features;
    ix/iy: [B, F, D, hw] source pixel coords.  Returns [B, F, D, hw]."""
    B, F, D, hw = ix.shape
    x0 = jnp.floor(ix)
    y0 = jnp.floor(iy)
    corners = ((x0, y0), (x0 + 1.0, y0), (x0, y0 + 1.0), (x0 + 1.0, y0 + 1.0))
    idx = jnp.stack(
        [(jnp.clip(yc, 0, h - 1).astype(jnp.int32) * w +
          jnp.clip(xc, 0, w - 1).astype(jnp.int32)) for xc, yc in corners],
        axis=2)                                             # [B, F, 4, D, hw]
    # TODO(synk): this 4-tap gather runs in XLA; an in-kernel jnp.take /
    # scalar-prefetch DMA gather would fuse it into the Pallas pipeline.
    vals = jnp.take_along_axis(mean_map, idx.reshape(B, F, 4 * D * hw), axis=2)
    vals = vals.reshape(B, F, 4, D, hw)

    M = B * F * D * hw
    crd = jnp.stack([ix.reshape(-1), iy.reshape(-1)], 0)    # [2, M]
    val = jnp.transpose(vals, (2, 0, 1, 3, 4)).reshape(4, M)

    R = -(-M // 128)
    tr = min(256, _round_up(R, 8))
    Rp = _round_up(R, tr)
    pad = Rp * 128 - M
    crd = jnp.pad(crd, ((0, 0), (0, pad))).reshape(2, Rp, 128)
    val = jnp.pad(val, ((0, 0), (0, pad))).reshape(4, Rp, 128)

    out = pl.pallas_call(
        functools.partial(_bilinear_warp_kernel, w=float(w), h=float(h)),
        out_shape=jax.ShapeDtypeStruct((Rp, 128), jnp.float32),
        grid=(Rp // tr,),
        in_specs=[pl.BlockSpec((2, tr, 128), lambda i: (0, i, 0)),
                  pl.BlockSpec((4, tr, 128), lambda i: (0, i, 0))],
        out_specs=pl.BlockSpec((tr, 128), lambda i: (i, 0)),
        compiler_params=pltpu.CompilerParams(
            dimension_semantics=("parallel",)),
    )(crd, val)
    return out.reshape(-1)[:M].reshape(B, F, D, hw)


# ---------------------------------------------------------------------------
# Glue: im2col, parameter setup
# ---------------------------------------------------------------------------

def im2col(x, kh, kw, stride, pad):
    """x: NHWC -> patches [B*oh*ow, kh*kw*C] (row-major over (b, oh, ow))."""
    B, H, W, C = x.shape
    xp = jnp.pad(x, ((0, 0), (pad, pad), (pad, pad), (0, 0)))
    oh = (H + 2 * pad - kh) // stride + 1
    ow = (W + 2 * pad - kw) // stride + 1
    cols = []
    for i in range(kh):
        for j in range(kw):
            cols.append(xp[:, i:i + stride * (oh - 1) + 1:stride,
                           j:j + stride * (ow - 1) + 1:stride, :])
    patches = jnp.stack(cols, axis=3)            # [B, oh, ow, kh*kw, C]
    return patches.reshape(B * oh * ow, kh * kw * C), (B, oh, ow)


def _fold_bn(gamma, beta, mean, var, eps=1e-5):
    scale = gamma / jnp.sqrt(var + eps)
    bias = beta - mean * scale
    return scale[None, :], bias[None, :]


def _conv_w_to_matmul(w):
    # torch conv weight [OC, IC, KH, KW] -> [KH*KW*IC, OC] (matches im2col order)
    oc, ic, kh, kw = w.shape
    return jnp.transpose(w, (2, 3, 1, 0)).reshape(kh * kw * ic, oc)


def init_encoder_params(key):
    keys = iter(jax.random.split(key, 64))

    def conv(oc, ic, kh, kw):
        return 0.05 * jax.random.normal(next(keys), (oc, ic, kh, kw),
                                        jnp.float32)

    def bn(c):
        gamma = 1.0 + 0.1 * jax.random.normal(next(keys), (c,), jnp.float32)
        beta = 0.1 * jax.random.normal(next(keys), (c,), jnp.float32)
        mean = 0.1 * jax.random.normal(next(keys), (c,), jnp.float32)
        var = 1.0 + 0.1 * jnp.abs(
            jax.random.normal(next(keys), (c,), jnp.float32))
        return _fold_bn(gamma, beta, mean, var)

    def folded(w_torch, c):
        scale, bias = bn(c)
        # fold BN scale into the matmul weights; keep bias as a VPU add
        w = _conv_w_to_matmul(w_torch) * scale
        return w.astype(jnp.bfloat16), bias

    p = {}
    p['conv1_w'], p['conv1_b'] = folded(conv(64, 3, 7, 7), 64)
    for blk in ('b0', 'b1'):                     # resnet18 layer1: 2 BasicBlocks
        p[f'{blk}_c1_w'], p[f'{blk}_c1_b'] = folded(conv(64, 64, 3, 3), 64)
        p[f'{blk}_c2_w'], p[f'{blk}_c2_b'] = folded(conv(64, 64, 3, 3), 64)
    return p


class ResnetEncoderMatchingPallas:
    """JAX/Pallas port of ResnetEncoderMatching (resnet18 first two blocks +
    cost-volume matching).  Synthetic deterministic weights, eval-mode BN."""

    def __init__(self, num_layers, pretrained, input_height, input_width,
                 min_depth_bin=0.1, max_depth_bin=1.0, num_depth_bins=80,
                 adaptive_bins=False, depth_binning='linear', key=None):
        if num_layers != 18:
            raise ValueError(f'{num_layers} is not supported here (resnet18 only)')
        # TODO(synk): 'pretrained' ImageNet weight loading is not replicated;
        # weights are deterministic synthetic values.
        self.adaptive_bins = adaptive_bins
        self.depth_binning = depth_binning
        self.num_depth_bins = num_depth_bins
        self.matching_height = input_height // 4
        self.matching_width = input_width // 4
        self.num_ch_enc = (64, 64, 128, 256, 512)
        self.params = init_encoder_params(
            key if key is not None else jax.random.PRNGKey(0))
        self.depth_bins = None
        self.warp_depths = None
        self.compute_depth_bins(min_depth_bin, max_depth_bin)

    # -- depth bins -----------------------------------------------------
    def compute_depth_bins(self, min_depth_bin, max_depth_bin):
        if self.depth_binning == 'inverse':
            bins = 1.0 / jnp.linspace(1.0 / max_depth_bin, 1.0 / min_depth_bin,
                                      self.num_depth_bins)[::-1]
        elif self.depth_binning == 'linear':
            bins = jnp.linspace(min_depth_bin, max_depth_bin,
                                self.num_depth_bins)
        else:
            raise NotImplementedError
        self.depth_bins = bins.astype(jnp.float32)
        self.warp_depths = (self.depth_bins[:, None, None] *
                            jnp.ones((self.num_depth_bins,
                                      self.matching_height,
                                      self.matching_width), jnp.float32))

    # -- feature extraction (resnet18 layer0 + layer1) -------------------
    def feature_extraction(self, image_nchw, return_all_feats=False,
                           with_mean=False):
        p = self.params
        x = jnp.transpose(image_nchw, (0, 2, 3, 1)).astype(jnp.float32)  # NHWC
        x = (x - 0.45) / 0.225
        pat, (B, oh, ow) = im2col(x.astype(jnp.bfloat16), 7, 7, 2, 3)
        f0 = conv_bn_act(pat, p['conv1_w'], p['conv1_b'],
                         relu=True).reshape(B, oh, ow, 64)
        f1 = maxpool_3x3_s2_p1(f0)
        mean_rows = None
        for bi, blk in enumerate(('b0', 'b1')):
            Bh, Hh, Wh, Ch = f1.shape
            identity = f1.reshape(Bh * Hh * Wh, Ch)
            pat1, _ = im2col(f1.astype(jnp.bfloat16), 3, 3, 1, 1)
            y = conv_bn_act(pat1, p[f'{blk}_c1_w'], p[f'{blk}_c1_b'],
                            relu=True)
            pat2, _ = im2col(y.reshape(Bh, Hh, Wh, Ch).astype(jnp.bfloat16),
                             3, 3, 1, 1)
            last = with_mean and bi == 1
            z = conv_bn_act(pat2, p[f'{blk}_c2_w'], p[f'{blk}_c2_b'],
                            residual=identity, relu=True, with_mean=last)
            if last:
                z, mean_rows = z
            f1 = z.reshape(Bh, Hh, Wh, Ch)
        feats = [f0, f1] if return_all_feats else f1
        if with_mean:
            Bh, Hh, Wh, _ = f1.shape
            return feats, mean_rows.reshape(Bh, Hh * Wh)
        return feats

    # -- cost volume ------------------------------------------------------
    def match_features(self, current_feats, lookup_feats_mean, relative_poses,
                       K, invK):
        """The reference (as written) reduces the warped lookup features with a
        channel mean and never differences against current_feats; since the
        mean is linear it is hoisted before the bilinear warp:
        mean_c(grid_sample(feat)) == grid_sample(mean_c(feat))."""
        h, w = self.matching_height, self.matching_width
        D = self.num_depth_bins
        B, F, hw = lookup_feats_mean.shape

        # geometry (BackprojectDepth + Project3D), vectorised over (b, f, d)
        xs, ys = jnp.meshgrid(jnp.arange(w, dtype=jnp.float32),
                              jnp.arange(h, dtype=jnp.float32), indexing='xy')
        pix = jnp.stack([xs.reshape(-1), ys.reshape(-1),
                         jnp.ones(hw, jnp.float32)], 0)          # [3, hw]
        cam = jnp.einsum('bij,jp->bip', invK[:, :3, :3], pix)    # [B, 3, hw]
        cam = self.depth_bins[None, :, None, None] * cam[:, None]  # [B,D,3,hw]
        world = jnp.concatenate(
            [cam, jnp.ones((B, D, 1, hw), jnp.float32)], axis=2)  # [B,D,4,hw]
        P = jnp.einsum('bij,bfjk->bfik', K, relative_poses)[:, :, :3, :]
        proj = jnp.einsum('bfij,bdjp->bfdip', P, world)           # [B,F,D,3,hw]
        ix = proj[:, :, :, 0] / (proj[:, :, :, 2] + 1e-7)
        iy = proj[:, :, :, 1] / (proj[:, :, :, 2] + 1e-7)
        # (reference normalises to [-1,1]; grid_sample(align_corners=True)
        #  maps straight back to pixel units, so ix/iy are used directly)

        # TODO(synk): the data-dependent skip of lookup frames whose relative
        # pose sums to 0 (missing frame) is not replicated here.
        warped = bilinear_warp_means(lookup_feats_mean, ix, iy, h, w)
        # reference: stack -> squeeze(1) -> permute -> mean(1) only
        # type-checks for a single used lookup frame, so take frame 0.
        return warped[:, 0].reshape(B, D, h, w)

    # -- forward ----------------------------------------------------------
    def forward(self, current_image, lookup_images, poses, K, invK,
                min_depth_bin=0, max_depth_bin=112):
        feats = self.feature_extraction(current_image, return_all_feats=True)
        current_feats = feats[-1]                               # NHWC
        if self.adaptive_bins:
            self.compute_depth_bins(min_depth_bin, max_depth_bin)
        B, F, C, H, W = lookup_images.shape
        lookup = lookup_images.reshape(B * F, C, H, W)
        lookup_feats, lookup_mean = self.feature_extraction(
            lookup, return_all_feats=False, with_mean=True)
        _, h, w, c = lookup_feats.shape
        lookup_mean = lookup_mean.reshape(B, F, h * w)
        cost = self.match_features(current_feats, lookup_mean, poses, K, invK)
        # return current feats in PyTorch NCHW layout
        return jnp.transpose(current_feats, (0, 3, 1, 2)), cost


# ---------------------------------------------------------------------------
# main
# ---------------------------------------------------------------------------

if __name__ == "__main__":
    key = jax.random.PRNGKey(0)
    k_img, k_look, k_param = jax.random.split(key, 3)

    B, F, H, W = 2, 1, 32, 32
    num_depth_bins = 8

    enc = ResnetEncoderMatchingPallas(
        num_layers=18, pretrained=False, input_height=H, input_width=W,
        min_depth_bin=0.5, max_depth_bin=4.0, num_depth_bins=num_depth_bins,
        adaptive_bins=True, depth_binning='linear', key=k_param)

    current_image = jax.random.uniform(k_img, (B, 3, H, W), jnp.float32)
    lookup_images = jax.random.uniform(k_look, (B, F, 3, H, W), jnp.float32)

    h, w = H // 4, W // 4

    def make_K(fx, fy):
        return jnp.array([[fx, 0., (w - 1) / 2., 0.],
                          [0., fy, (h - 1) / 2., 0.],
                          [0., 0., 1., 0.],
                          [0., 0., 0., 1.]], jnp.float32)

    K = jnp.stack([make_K(w * 1.2, h * 1.1), make_K(w * 1.0, h * 1.3)], 0)
    invK = jnp.stack([jnp.linalg.inv(K[0]), jnp.linalg.inv(K[1])], 0)

    def make_pose(tx, ty, tz):
        T = jnp.eye(4, dtype=jnp.float32)
        return T.at[0, 3].set(tx).at[1, 3].set(ty).at[2, 3].set(tz)

    poses = jnp.stack([make_pose(0.05, -0.02, 0.10),
                       make_pose(-0.03, 0.04, 0.08)], 0)[:, None]  # [B, F, 4, 4]

    current_feats, cost = enc.forward(current_image, lookup_images, poses,
                                      K, invK, min_depth_bin=0.5,
                                      max_depth_bin=4.0)
    jax.block_until_ready((current_feats, cost))

    assert current_feats.shape == (B, 64, h, w), current_feats.shape
    assert cost.shape == (B, num_depth_bins, h, w), cost.shape
    assert bool(jnp.all(jnp.isfinite(current_feats)))
    assert bool(jnp.all(jnp.isfinite(cost)))
    print("KERNEL_OK")
</pallas_src>

<mosaic_0001>
module attributes {stable_mosaic.version = 11 : i64} {
  func.func @_conv_bn_act_kernel(%arg0: i32, %arg1: memref<512x147xbf16, #tpu.memory_space<vmem>>, %arg2: memref<147x64xbf16, #tpu.memory_space<vmem>>, %arg3: memref<1x64xf32, #tpu.memory_space<vmem>>, %arg4: memref<512x64xf32, #tpu.memory_space<vmem>>) attributes {dimension_semantics = [#tpu.dimension_semantics<parallel>], iteration_bounds = array<i64: 1>, scalar_prefetch = 0 : i64, scratch_operands = 0 : i64, tpu.core_type = #tpu.core_type<tc>, window_params = [{transform_indices = @transform_0, window_bounds = array<i64: 512, 147>}, {pipeline_mode = #tpu.pipeline_mode<synchronous>, transform_indices = @transform_1, window_bounds = array<i64: 147, 64>}, {pipeline_mode = #tpu.pipeline_mode<synchronous>, transform_indices = @transform_2, window_bounds = array<i64: 1, 64>}, {transform_indices = @transform_3, window_bounds = array<i64: 512, 64>}]} {
    %c0 = arith.constant 0 : index
    %c0_0 = arith.constant 0 : index
    %0 = vector.load %arg1[%c0, %c0_0] : memref<512x147xbf16, #tpu.memory_space<vmem>>, vector<512x147xbf16>
    %c0_1 = arith.constant 0 : index
    %c0_2 = arith.constant 0 : index
    %1 = vector.load %arg2[%c0_1, %c0_2] : memref<147x64xbf16, #tpu.memory_space<vmem>>, vector<147x64xbf16>
    %cst = arith.constant dense<0.000000e+00> : vector<512x64xf32>
    %2 = tpu.matmul %0, %1, %cst {dimension_numbers = #tpu.dot_dimension_numbers<[1], [0], [0], [1], [0, 0, 1, 1], [], []>} : vector<512x147xbf16>, vector<147x64xbf16>, vector<512x64xf32> -> vector<512x64xf32>
    %c0_3 = arith.constant 0 : index
    %c0_4 = arith.constant 0 : index
    %3 = vector.load %arg3[%c0_3, %c0_4] : memref<1x64xf32, #tpu.memory_space<vmem>>, vector<1x64xf32>
    %4 = vector.broadcast %3 : vector<1x64xf32> to vector<512x64xf32>
    %5 = arith.addf %2, %4 : vector<512x64xf32>
    %cst_5 = arith.constant 0.000000e+00 : f32
    %6 = vector.broadcast %cst_5 : f32 to vector<512x64xf32>
    %7 = arith.maximumf %5, %6 : vector<512x64xf32>
    %c0_6 = arith.constant 0 : index
    %c0_7 = arith.constant 0 : index
    %8 = vector.load %arg4[%c0_6, %c0_7] : memref<512x64xf32, #tpu.memory_space<vmem>>, vector<512x64xf32>
    tpu.vector_store %arg4[%c0_6, %c0_7], %7 {strides = array<i32>} : memref<512x64xf32, #tpu.memory_space<vmem>>, vector<512x64xf32>,
    return
  }
  func.func @transform_0(%arg0: i32) -> (i32, i32) {
    %c0_i32 = arith.constant 0 : i32
    %c0_i32_0 = arith.constant 0 : i32
    return %arg0, %c0_i32 : i32, i32
  }
  func.func @transform_1(%arg0: i32) -> (i32, i32) {
    %c0_i32 = arith.constant 0 : i32
    %c0_i32_0 = arith.constant 0 : i32
    %c0_i32_1 = arith.constant 0 : i32
    return %c0_i32, %c0_i32_0 : i32, i32
  }
  func.func @transform_2(%arg0: i32) -> (i32, i32) {
    %c0_i32 = arith.constant 0 : i32
    %c0_i32_0 = arith.constant 0 : i32
    %c0_i32_1 = arith.constant 0 : i32
    return %c0_i32, %c0_i32_0 : i32, i32
  }
  func.func @transform_3(%arg0: i32) -> (i32, i32) {
    %c0_i32 = arith.constant 0 : i32
    %c0_i32_0 = arith.constant 0 : i32
    return %arg0, %c0_i32 : i32, i32
  }
}

</mosaic_0001>

<llo_original>
// kernel: tpu_custom_call.1
$region0: #{tpu_custom_call.1}
  #allocation0 [shape = 'u32[]', space=smem, size = 0x4, offset = 0x4, fixed_abs, tag = 'smem constant byte address 0x4 - core index']
  #allocation1 [shape = 'u32[72,128]{1,0:T(1,128)}', space=vmem, size = 0x9000, scoped, tag = 'internal scratch']
  %s0 = inlined_call_operand.vmem [shape: bf16[512,147], index: 0, kind: input, shape index: {}]
  %s1 = inlined_call_operand.vmem [shape: bf16[147,64], index: 1, kind: input, shape index: {}]
  %s2 = inlined_call_operand.vmem [shape: f32[1,64], index: 2, kind: input, shape index: {}]
  %s3 = inlined_call_operand.vmem [shape: f32[512,64], index: 3, kind: output, shape index: {}]
  %s4 = sld [smem:[#allocation0]]
  $region22: #{tpu_custom_call.1} parent=0
    _
  %s6 = ssub.s32 1, %s4
  %s7 = scalar_select 0, %s6, %s4
  // Predicated region
  $region2: #{tpu_custom_call.1} parent=0 // pred_check
    _
  $region3: #{tpu_custom_call.1} parent=0 // pred_check_branch
    %9 = sbr.rel (0) target = $region5
  $region4: #{tpu_custom_call.1} parent=0 // pred_region
    _
  $region5: #{tpu_custom_call.1} parent=0 // pred_fallthru
    _
  // Predicated region
  $region6: #{tpu_custom_call.1} parent=0 // pred_check
    _
  $region7: #{tpu_custom_call.1} parent=0 // pred_check_branch
    %11 = sbr.rel (0) target = $region9
  $region8: #{tpu_custom_call.1} parent=0 // pred_region
    _
  $region9: #{tpu_custom_call.1} parent=0 // pred_fallthru
    _
  // Predicated region
  $region10: #{tpu_custom_call.1} parent=0 // pred_check
    _
  $region11: #{tpu_custom_call.1} parent=0 // pred_check_branch
    %13 = sbr.rel (0) target = $region13
  $region12: #{tpu_custom_call.1} parent=0 // pred_region
    _
  $region13: #{tpu_custom_call.1} parent=0 // pred_fallthru
    _
  %v15 = vld [vmem:[%s0] sm:$0xff]
  %v16 = vld [vmem:[%s0 + $0x8] sm:$0xff]
  %v17 = vld [vmem:[%s0 + $0x10] sm:$0xff]
  %v18 = vld [vmem:[%s0 + $0x18] sm:$0xff]
  %v19 = vld [vmem:[%s0 + $0x20] sm:$0xff]
  %v20 = vld [vmem:[%s0 + $0x28] sm:$0xff]
  %v21 = vld [vmem:[%s0 + $0x30] sm:$0xff]
  %v22 = vld [vmem:[%s0 + $0x38] sm:$0xff]
  %v23 = vld [vmem:[%s0 + $0x40] sm:$0xff]
  %v24 = vld [vmem:[%s0 + $0x48] sm:$0xff]
  %v25 = vld [vmem:[%s0 + $0x50] sm:$0xff]
  %v26 = vld [vmem:[%s0 + $0x58] sm:$0xff]
  %v27 = vld [vmem:[%s0 + $0x60] sm:$0xff]
  %v28 = vld [vmem:[%s0 + $0x68] sm:$0xff]
  %v29 = vld [vmem:[%s0 + $0x70] sm:$0xff]
  %v30 = vld [vmem:[%s0 + $0x78] sm:$0xff]
  %v31 = vld [vmem:[%s0 + $0x80] sm:$0xff]
  %v32 = vld [vmem:[%s0 + $0x88] sm:$0xff]
  %v33 = vld [vmem:[%s0 + $0x90] sm:$0xff]
  %v34 = vld [vmem:[%s0 + $0x98] sm:$0xff]
  %v35 = vld [vmem:[%s0 + $0xa0] sm:$0xff]
  %v36 = vld [vmem:[%s0 + $0xa8] sm:$0xff]
  %v37 = vld [vmem:[%s0 + $0xb0] sm:$0xff]
  %v38 = vld [vmem:[%s0 + $0xb8] sm:$0xff]
  %v39 = vld [vmem:[%s0 + $0xc0] sm:$0xff]
  %v40 = vld [vmem:[%s0 + $0xc8] sm:$0xff]
  %v41 = vld [vmem:[%s0 + $0xd0] sm:$0xff]
  %v42 = vld [vmem:[%s0 + $0xd8] sm:$0xff]
  %v43 = vld [vmem:[%s0 + $0xe0] sm:$0xff]
  %v44 = vld [vmem:[%s0 + $0xe8] sm:$0xff]
  %v45 = vld [vmem:[%s0 + $0xf0] sm:$0xff]
  %v46 = vld [vmem:[%s0 + $0xf8] sm:$0xff]
  %v47 = vld [vmem:[%s0 + $0x100] sm:$0xff]
  %v48 = vld [vmem:[%s0 + $0x108] sm:$0xff]
  %v49 = vld [vmem:[%s0 + $0x110] sm:$0xff]
  %v50 = vld [vmem:[%s0 + $0x118] sm:$0xff]
  %v51 = vld [vmem:[%s0 + $0x120] sm:$0xff]
  %v52 = vld [vmem:[%s0 + $0x128] sm:$0xff]
  %v53 = vld [vmem:[%s0 + $0x130] sm:$0xff]
  %v54 = vld [vmem:[%s0 + $0x138] sm:$0xff]
  %v55 = vld [vmem:[%s0 + $0x140] sm:$0xff]
  %v56 = vld [vmem:[%s0 + $0x148] sm:$0xff]
  %v57 = vld [vmem:[%s0 + $0x150] sm:$0xff]
  %v58 = vld [vmem:[%s0 + $0x158] sm:$0xff]
  %v59 = vld [vmem:[%s0 + $0x160] sm:$0xff]
  %v60 = vld [vmem:[%s0 + $0x168] sm:$0xff]
  %v61 = vld [vmem:[%s0 + $0x170] sm:$0xff]
  %v62 = vld [vmem:[%s0 + $0x178] sm:$0xff]
  %v63 = vld [vmem:[%s0 + $0x180] sm:$0xff]
  %v64 = vld [vmem:[%s0 + $0x188] sm:$0xff]
  %v65 = vld [vmem:[%s0 + $0x190] sm:$0xff]
  %v66 = vld [vmem:[%s0 + $0x198] sm:$0xff]
  %v67 = vld [vmem:[%s0 + $0x1a0] sm:$0xff]
  %v68 = vld [vmem:[%s0 + $0x1a8] sm:$0xff]
  %v69 = vld [vmem:[%s0 + $0x1b0] sm:$0xff]
  %v70 = vld [vmem:[%s0 + $0x1b8] sm:$0xff]
  %v71 = vld [vmem:[%s0 + $0x1c0] sm:$0xff]
  %v72 = vld [vmem:[%s0 + $0x1c8] sm:$0xff]
  %v73 = vld [vmem:[%s0 + $0x1d0] sm:$0xff]
  %v74 = vld [vmem:[%s0 + $0x1d8] sm:$0xff]
  %v75 = vld [vmem:[%s0 + $0x1e0] sm:$0xff]
  %v76 = vld [vmem:[%s0 + $0x1e8] sm:$0xff]
  %v77 = vld [vmem:[%s0 + $0x1f0] sm:$0xff]
  %v78 = vld [vmem:[%s0 + $0x1f8] sm:$0xff]
  %v79 = vld [vmem:[%s1] sm:$0xf]
  %v80 = vld [vmem:[%s1 + $0x4] sm:$0xf]
  %v81 = vld [vmem:[%s1 + $0x8] sm:$0xf]
  %v82 = vld [vmem:[%s1 + $0xc] sm:$0xf]
  %v83 = vld [vmem:[%s1 + $0x10] sm:$0xf]
  %v84 = vld [vmem:[%s1 + $0x14] sm:$0xf]
  %v85 = vld [vmem:[%s1 + $0x18] sm:$0xf]
  %v86 = vld [vmem:[%s1 + $0x1c] sm:$0xf]
  %v87 = vld [vmem:[%s1 + $0x20] sm:$0xf]
  %v88 = vld [vmem:[%s1 + $0x24] sm:$0xf]
  %v89 = vld [vmem:[%s1 + $0x28] sm:$0xf]
  %v90 = vld [vmem:[%s1 + $0x2c] sm:$0xf]
  %v91 = vld [vmem:[%s1 + $0x30] sm:$0xf]
  %v92 = vld [vmem:[%s1 + $0x34] sm:$0xf]
  %v93 = vld [vmem:[%s1 + $0x38] sm:$0xf]
  %v94 = vld [vmem:[%s1 + $0x3c] sm:$0xf]
  %v95 = vld [vmem:[%s1 + $0x40] sm:$0xf]
  %v96 = vld [vmem:[%s1 + $0x44] sm:$0xf]
  %v97 = vld [vmem:[%s1 + $0x48] sm:$0x3]
  %v98 = vld [vmem:[%s2] sm:$0x1]
  %v100 = vperm.slane %v98, 0
  %v166 = vunpack.c.l.b16 %v15
  %v167 = vunpack.c.h.b16 %v15
  %v168 = vunpack.c.l.b16 %v16
  %v169 = vunpack.c.h.b16 %v16
  %v170 = vunpack.c.l.b16 %v17
  %v171 = vunpack.c.h.b16 %v17
  %v172 = vunpack.c.l.b16 %v18
  %v173 = vunpack.c.h.b16 %v18
  %v174 = vunpack.c.l.b16 %v19
  %v175 = vunpack.c.h.b16 %v19
  %v176 = vunpack.c.l.b16 %v20
  %v177 = vunpack.c.h.b16 %v20
  %v178 = vunpack.c.l.b16 %v21
  %v179 = vunpack.c.h.b16 %v21
  %v180 = vunpack.c.l.b16 %v22
  %v181 = vunpack.c.h.b16 %v22
  %v182 = vunpack.c.l.b16 %v23
  %v183 = vunpack.c.h.b16 %v23
  %v184 = vunpack.c.l.b16 %v24
  %v185 = vunpack.c.h.b16 %v24
  %v186 = vunpack.c.l.b16 %v25
  %v187 = vunpack.c.h.b16 %v25
  %v188 = vunpack.c.l.b16 %v26
  %v189 = vunpack.c.h.b16 %v26
  %v190 = vunpack.c.l.b16 %v27
  %v191 = vunpack.c.h.b16 %v27
  %v192 = vunpack.c.l.b16 %v28
  %v193 = vunpack.c.h.b16 %v28
  %v194 = vunpack.c.l.b16 %v29
  %v195 = vunpack.c.h.b16 %v29
  %v196 = vunpack.c.l.b16 %v30
  %v197 = vunpack.c.h.b16 %v30
  %v198 = vunpack.c.l.b16 %v31
  %v199 = vunpack.c.h.b16 %v31
  %v200 = vunpack.c.l.b16 %v32
  %v201 = vunpack.c.h.b16 %v32
  %v202 = vunpack.c.l.b16 %v33
  %v203 = vunpack.c.h.b16 %v33
  %v204 = vunpack.c.l.b16 %v34
  %v205 = vunpack.c.h.b16 %v34
  %v206 = vunpack.c.l.b16 %v35
  %v207 = vunpack.c.h.b16 %v35
  %v208 = vunpack.c.l.b16 %v36
  %v209 = vunpack.c.h.b16 %v36
  %v210 = vunpack.c.l.b16 %v37
  %v211 = vunpack.c.h.b16 %v37
  %v212 = vunpack.c.l.b16 %v38
  %v213 = vunpack.c.h.b16 %v38
  %v214 = vunpack.c.l.b16 %v39
  %v215 = vunpack.c.h.b16 %v39
  %v216 = vunpack.c.l.b16 %v40
  %v217 = vunpack.c.h.b16 %v40
  %v218 = vunpack.c.l.b16 %v41
  %v219 = vunpack.c.h.b16 %v41
  %v220 = vunpack.c.l.b16 %v42
  %v221 = vunpack.c.h.b16 %v42
  %v222 = vunpack.c.l.b16 %v43
  %v223 = vunpack.c.h.b16 %v43
  %v224 = vunpack.c.l.b16 %v44
  %v225 = vunpack.c.h.b16 %v44
  %v226 = vunpack.c.l.b16 %v45
  %v227 = vunpack.c.h.b16 %v45
  %v228 = vunpack.c.l.b16 %v46
  %v229 = vunpack.c.h.b16 %v46
  %v230 = vunpack.c.l.b16 %v47
  %v231 = vunpack.c.h.b16 %v47
  %v232 = vunpack.c.l.b16 %v48
  %v233 = vunpack.c.h.b16 %v48
  %v234 = vunpack.c.l.b16 %v49
  %v235 = vunpack.c.h.b16 %v49
  %v236 = vunpack.c.l.b16 %v50
  %v237 = vunpack.c.h.b16 %v50
  %v238 = vunpack.c.l.b16 %v51
  %v239 = vunpack.c.h.b16 %v51
  %v240 = vunpack.c.l.b16 %v52
  %v241 = vunpack.c.h.b16 %v52
  %v242 = vunpack.c.l.b16 %v53
  %v243 = vunpack.c.h.b16 %v53
  %v244 = vunpack.c.l.b16 %v54
  %v245 = vunpack.c.h.b16 %v54
  %v246 = vunpack.c.l.b16 %v55
  %v247 = vunpack.c.h.b16 %v55
  %v248 = vunpack.c.l.b16 %v56
  %v249 = vunpack.c.h.b16 %v56
  %v250 = vunpack.c.l.b16 %v57
  %v251 = vunpack.c.h.b16 %v57
  %v252 = vunpack.c.l.b16 %v58
  %v253 = vunpack.c.h.b16 %v58
  %v254 = vunpack.c.l.b16 %v59
  %v255 = vunpack.c.h.b16 %v59
  %v256 = vunpack.c.l.b16 %v60
  %v257 = vunpack.c.h.b16 %v60
  %v258 = vunpack.c.l.b16 %v61
  %v259 = vunpack.c.h.b16 %v61
  %v260 = vunpack.c.l.b16 %v62
  %v261 = vunpack.c.h.b16 %v62
  %v262 = vunpack.c.l.b16 %v63
  %v263 = vunpack.c.h.b16 %v63
  %v264 = vunpack.c.l.b16 %v64
  %v265 = vunpack.c.h.b16 %v64
  %v266 = vunpack.c.l.b16 %v65
  %v267 = vunpack.c.h.b16 %v65
  %v268 = vunpack.c.l.b16 %v66
  %v269 = vunpack.c.h.b16 %v66
  %v270 = vunpack.c.l.b16 %v67
  %v271 = vunpack.c.h.b16 %v67
  %v272 = vunpack.c.l.b16 %v68
  %v273 = vunpack.c.h.b16 %v68
  %v274 = vunpack.c.l.b16 %v69
  %v275 = vunpack.c.h.b16 %v69
  %v276 = vunpack.c.l.b16 %v70
  %v277 = vunpack.c.h.b16 %v70
  %v278 = vunpack.c.l.b16 %v71
  %v279 = vunpack.c.h.b16 %v71
  %v280 = vunpack.c.l.b16 %v72
  %v281 = vunpack.c.h.b16 %v72
  %v282 = vunpack.c.l.b16 %v73
  %v283 = vunpack.c.h.b16 %v73
  %v284 = vunpack.c.l.b16 %v74
  %v285 = vunpack.c.h.b16 %v74
  %v286 = vunpack.c.l.b16 %v75
  %v287 = vunpack.c.h.b16 %v75
  %v288 = vunpack.c.l.b16 %v76
  %v289 = vunpack.c.h.b16 %v76
  %v290 = vunpack.c.l.b16 %v77
  %v291 = vunpack.c.h.b16 %v77
  %v292 = vunpack.c.l.b16 %v78
  %v293 = vunpack.c.h.b16 %v78
  %v294 = vpack.c.b16 %v168, %v166
  %v295 = vpack.c.b16 %v169, %v167
  %v296 = vpack.c.b16 %v172, %v170
  %v297 = vpack.c.b16 %v173, %v171
  %v298 = vpack.c.b16 %v176, %v174
  %v299 = vpack.c.b16 %v177, %v175
  %v300 = vpack.c.b16 %v180, %v178
  %v301 = vpack.c.b16 %v181, %v179
  %v302 = vpack.c.b16 %v184, %v182
  %v303 = vpack.c.b16 %v185, %v183
  %v304 = vpack.c.b16 %v188, %v186
  %v305 = vpack.c.b16 %v189, %v187
  %v306 = vpack.c.b16 %v192, %v190
  %v307 = vpack.c.b16 %v193, %v191
  %v308 = vpack.c.b16 %v196, %v194
  %v309 = vpack.c.b16 %v197, %v195
  %v310 = vpack.c.b16 %v200, %v198
  %v311 = vpack.c.b16 %v201, %v199
  %v312 = vpack.c.b16 %v204, %v202
  %v313 = vpack.c.b16 %v205, %v203
  %v314 = vpack.c.b16 %v208, %v206
  %v315 = vpack.c.b16 %v209, %v207
  %v316 = vpack.c.b16 %v212, %v210
  %v317 = vpack.c.b16 %v213, %v211
  %v318 = vpack.c.b16 %v216, %v214
  %v319 = vpack.c.b16 %v217, %v215
  %v320 = vpack.c.b16 %v220, %v218
  %v321 = vpack.c.b16 %v221, %v219
  %v322 = vpack.c.b16 %v224, %v222
  %v323 = vpack.c.b16 %v225, %v223
  %v324 = vpack.c.b16 %v228, %v226
  %v325 = vpack.c.b16 %v229, %v227
  %v326 = vpack.c.b16 %v232, %v230
  %v327 = vpack.c.b16 %v233, %v231
  %v328 = vpack.c.b16 %v236, %v234
  %v329 = vpack.c.b16 %v237, %v235
  %v330 = vpack.c.b16 %v240, %v238
  %v331 = vpack.c.b16 %v241, %v239
  %v332 = vpack.c.b16 %v244, %v242
  %v333 = vpack.c.b16 %v245, %v243
  %v334 = vpack.c.b16 %v248, %v246
  %v335 = vpack.c.b16 %v249, %v247
  %v336 = vpack.c.b16 %v252, %v250
  %v337 = vpack.c.b16 %v253, %v251
  %v338 = vpack.c.b16 %v256, %v254
  %v339 = vpack.c.b16 %v257, %v255
  %v340 = vpack.c.b16 %v260, %v258
  %v341 = vpack.c.b16 %v261, %v259
  %v342 = vpack.c.b16 %v264, %v262
  %v343 = vpack.c.b16 %v265, %v263
  %v344 = vpack.c.b16 %v268, %v266
  %v345 = vpack.c.b16 %v269, %v267
  %v346 = vpack.c.b16 %v272, %v270
  %v347 = vpack.c.b16 %v273, %v271
  %v348 = vpack.c.b16 %v276, %v274
  %v349 = vpack.c.b16 %v277, %v275
  %v350 = vpack.c.b16 %v280, %v278
  %v351 = vpack.c.b16 %v281, %v279
  %v352 = vpack.c.b16 %v284, %v282
  %v353 = vpack.c.b16 %v285, %v283
  %v354 = vpack.c.b16 %v288, %v286
  %v355 = vpack.c.b16 %v289, %v287
  %v356 = vpack.c.b16 %v292, %v290
  %v357 = vpack.c.b16 %v293, %v291
  %v409 = vunpack.c.l.b16 %v79
  %v410 = vunpack.c.l.b16 %v80
  %v411 = vunpack.c.l.b16 %v81
  %v412 = vunpack.c.l.b16 %v82
  %v413 = vunpack.c.l.b16 %v83
  %v414 = vunpack.c.l.b16 %v84
  %v415 = vunpack.c.l.b16 %v85
  %v416 = vunpack.c.l.b16 %v86
  %v417 = vunpack.c.l.b16 %v87
  %v418 = vunpack.c.l.b16 %v88
  %v419 = vunpack.c.l.b16 %v89
  %v420 = vunpack.c.l.b16 %v90
  %v421 = vunpack.c.l.b16 %v91
  %v422 = vunpack.c.l.b16 %v92
  %v423 = vunpack.c.l.b16 %v93
  %v424 = vunpack.c.l.b16 %v94
  %v425 = vunpack.c.l.b16 %v95
  %v426 = vunpack.c.l.b16 %v96
  %v427 = vunpack.c.l.b16 %v97
  %v428 = vpack.c.b16 %v410, %v409
  %v429 = vpack.c.b16 %v412, %v411
  %v430 = vpack.c.b16 %v414, %v413
  %v431 = vpack.c.b16 %v416, %v415
  %v432 = vpack.c.b16 %v418, %v417
  %v433 = vpack.c.b16 %v420, %v419
  %v434 = vpack.c.b16 %v422, %v421
  %v435 = vpack.c.b16 %v424, %v423
  %v436 = vpack.c.b16 %v426, %v425
  %v437 = vpack.c.b16 %v427, %v427
  %vm447 = vcmask 154624
  %v449 = vsel %vm447, %v295, 0
  %v452 = vsel %vm447, %v297, 0
  %v455 = vsel %vm447, %v299, 0
  %v458 = vsel %vm447, %v301, 0
  %v461 = vsel %vm447, %v303, 0
  %v464 = vsel %vm447, %v305, 0
  %v467 = vsel %vm447, %v307, 0
  %v470 = vsel %vm447, %v309, 0
  %v473 = vsel %vm447, %v311, 0
  %v476 = vsel %vm447, %v313, 0
  %v479 = vsel %vm447, %v315, 0
  %v482 = vsel %vm447, %v317, 0
  %v485 = vsel %vm447, %v319, 0
  %v488 = vsel %vm447, %v321, 0
  %v491 = vsel %vm447, %v323, 0
  %v494 = vsel %vm447, %v325, 0
  %v497 = vsel %vm447, %v327, 0
  %v500 = vsel %vm447, %v329, 0
  %v503 = vsel %vm447, %v331, 0
  %v506 = vsel %vm447, %v333, 0
  %v509 = vsel %vm447, %v335, 0
  %v512 = vsel %vm447, %v337, 0
  %v515 = vsel %vm447, %v339, 0
  %v518 = vsel %vm447, %v341, 0
  %v521 = vsel %vm447, %v343, 0
  %v524 = vsel %vm447, %v345, 0
  %v527 = vsel %vm447, %v347, 0
  %v530 = vsel %vm447, %v349, 0
  %v533 = vsel %vm447, %v351, 0
  %v536 = vsel %vm447, %v353, 0
  %v539 = vsel %vm447, %v355, 0
  %v542 = vsel %vm447, %v357, 0
  %vm544 = vcmask 1040384
  %vm545 = vcmask 1041408
  %v546 = vsel %vm544, 4294967295, 65535
  %v547 = vsel %vm545, %v546, 0
  %v549 = vand.u32 %v437, %v547
  %551 = vmatpush.bf16.msra.mxu0 %v435
  %552 = vmatpush.bf16.msra.mxu0 %v434
  %553 = vmatpush.bf16.msra.mxu0 %v433
  %554 = vmatpush.bf16.msra.mxu0 %v432
  %555 = vmatpush.bf16.msra.mxu0 %v431
  %556 = vmatpush.bf16.msra.mxu0 %v430
  %557 = vmatpush.bf16.msra.mxu0 %v429
  %558 = vmatpush.bf16.msra.mxu0 %v428
  %559 = vmatmul.bf16.gmra.mxu0 %v294
  %v560 = vpop.f32.mrf.mxu0
  %v561 = vadd.f32 %v100, %v560
  %v562 = vpop.f32.mrf.mxu0
  %v563 = vadd.f32 %v100, %v562
  %564 = vmatmul.bf16.gmra.mxu0 %v296
  %v565 = vpop.f32.mrf.mxu0
  %v566 = vadd.f32 %v100, %v565
  %v567 = vpop.f32.mrf.mxu0
  %v568 = vadd.f32 %v100, %v567
  %569 = vmatmul.bf16.gmra.mxu0 %v298
  %v570 = vpop.f32.mrf.mxu0
  %v571 = vadd.f32 %v100, %v570
  %v572 = vpop.f32.mrf.mxu0
  %v573 = vadd.f32 %v100, %v572
  %574 = vmatmul.bf16.gmra.mxu0 %v300
  %v575 = vpop.f32.mrf.mxu0
  %v576 = vadd.f32 %v100, %v575
  %v577 = vpop.f32.mrf.mxu0
  %v578 = vadd.f32 %v100, %v577
  %579 = vmatmul.bf16.gmra.mxu0 %v302
  %v580 = vpop.f32.mrf.mxu0
  %v581 = vadd.f32 %v100, %v580
  %v582 = vpop.f32.mrf.mxu0
  %v583 = vadd.f32 %v100, %v582
  %584 = vmatmul.bf16.gmra.mxu0 %v304
  %v585 = vpop.f32.mrf.mxu0
  %v586 = vadd.f32 %v100, %v585
  %v587 = vpop.f32.mrf.mxu0
  %v588 = vadd.f32 %v100, %v587
  %589 = vmatmul.bf16.gmra.mxu0 %v306
  %v590 = vpop.f32.mrf.mxu0
  %v591 = vadd.f32 %v100, %v590
  %v592 = vpop.f32.mrf.mxu0
  %v593 = vadd.f32 %v100, %v592
  %594 = vmatmul.bf16.gmra.mxu0 %v308
  %v595 = vpop.f32.mrf.mxu0
  %v596 = vadd.f32 %v100, %v595
  %v597 = vpop.f32.mrf.mxu0
  %v598 = vadd.f32 %v100, %v597
  %599 = vmatmul.bf16.gmra.mxu0 %v310
  %v600 = vpop.f32.mrf.mxu0
  %v601 = vadd.f32 %v100, %v600
  %v602 = vpop.f32.mrf.mxu0
  %v603 = vadd.f32 %v100, %v602
  %604 = vmatmul.bf16.gmra.mxu0 %v312
  %v605 = vpop.f32.mrf.mxu0
  %v606 = vadd.f32 %v100, %v605
  %v607 = vpop.f32.mrf.mxu0
  %v608 = vadd.f32 %v100, %v607
  %609 = vmatmul.bf16.gmra.mxu0 %v314
  %v610 = vpop.f32.mrf.mxu0
  %v611 = vadd.f32 %v100, %v610
  %v612 = vpop.f32.mrf.mxu0
  %v613 = vadd.f32 %v100, %v612
  %614 = vmatmul.bf16.gmra.mxu0 %v316
  %v615 = vpop.f32.mrf.mxu0
  %v616 = vadd.f32 %v100, %v615
  %v617 = vpop.f32.mrf.mxu0
  %v618 = vadd.f32 %v100, %v617
  %619 = vmatmul.bf16.gmra.mxu0 %v318
  %v620 = vpop.f32.mrf.mxu0
  %v621 = vadd.f32 %v100, %v620
  %v622 = vpop.f32.mrf.mxu0
  %v623 = vadd.f32 %v100, %v622
  %624 = vmatmul.bf16.gmra.mxu0 %v320
  %v625 = vpop.f32.mrf.mxu0
  %v626 = vadd.f32 %v100, %v625
  %v627 = vpop.f32.mrf.mxu0
  %v628 = vadd.f32 %v100, %v627
  %629 = vmatmul.bf16.gmra.mxu0 %v322
  %v630 = vpop.f32.mrf.mxu0
  %v631 = vadd.f32 %v100, %v630
  %v632 = vpop.f32.mrf.mxu0
  %v633 = vadd.f32 %v100, %v632
  %634 = vmatmul.bf16.gmra.mxu0 %v324
  %v635 = vpop.f32.mrf.mxu0
  %v636 = vadd.f32 %v100, %v635
  %v637 = vpop.f32.mrf.mxu0
  %v638 = vadd.f32 %v100, %v637
  %639 = vmatmul.bf16.gmra.mxu0 %v326
  %v640 = vpop.f32.mrf.mxu0
  %v641 = vadd.f32 %v100, %v640
  %v642 = vpop.f32.mrf.mxu0
  %v643 = vadd.f32 %v100, %v642
  %644 = vmatmul.bf16.gmra.mxu0 %v328
  %v645 = vpop.f32.mrf.mxu0
  %v646 = vadd.f32 %v100, %v645
  %v647 = vpop.f32.mrf.mxu0
  %v648 = vadd.f32 %v100, %v647
  %649 = vmatmul.bf16.gmra.mxu0 %v330
  %v650 = vpop.f32.mrf.mxu0
  %v651 = vadd.f32 %v100, %v650
  %v652 = vpop.f32.mrf.mxu0
  %v653 = vadd.f32 %v100, %v652
  %654 = vmatmul.bf16.gmra.mxu0 %v332
  %v655 = vpop.f32.mrf.mxu0
  %v656 = vadd.f32 %v100, %v655
  %v657 = vpop.f32.mrf.mxu0
  %v658 = vadd.f32 %v100, %v657
  %659 = vmatmul.bf16.gmra.mxu0 %v334
  %v660 = vpop.f32.mrf.mxu0
  %v661 = vadd.f32 %v100, %v660
  %v662 = vpop.f32.mrf.mxu0
  %v663 = vadd.f32 %v100, %v662
  %664 = vmatmul.bf16.gmra.mxu0 %v336
  %v665 = vpop.f32.mrf.mxu0
  %v666 = vadd.f32 %v100, %v665
  %v667 = vpop.f32.mrf.mxu0
  %v668 = vadd.f32 %v100, %v667
  %669 = vmatmul.bf16.gmra.mxu0 %v338
  %v670 = vpop.f32.mrf.mxu0
  %v671 = vadd.f32 %v100, %v670
  %v672 = vpop.f32.mrf.mxu0
  %v673 = vadd.f32 %v100, %v672
  %674 = vmatmul.bf16.gmra.mxu0 %v340
  %v675 = vpop.f32.mrf.mxu0
  %v676 = vadd.f32 %v100, %v675
  %v677 = vpop.f32.mrf.mxu0
  %v678 = vadd.f32 %v100, %v677
  %679 = vmatmul.bf16.gmra.mxu0 %v342
  %v680 = vpop.f32.mrf.mxu0
  %v681 = vadd.f32 %v100, %v680
  %v682 = vpop.f32.mrf.mxu0
  %v683 = vadd.f32 %v100, %v682
  %684 = vmatmul.bf16.gmra.mxu0 %v344
  %v685 = vpop.f32.mrf.mxu0
  %v686 = vadd.f32 %v100, %v685
  %v687 = vpop.f32.mrf.mxu0
  %v688 = vadd.f32 %v100, %v687
  %689 = vmatmul.bf16.gmra.mxu0 %v346
  %v690 = vpop.f32.mrf.mxu0
  %v691 = vadd.f32 %v100, %v690
  %v692 = vpop.f32.mrf.mxu0
  %v693 = vadd.f32 %v100, %v692
  %694 = vmatmul.bf16.gmra.mxu0 %v348
  %v695 = vpop.f32.mrf.mxu0
  %v696 = vadd.f32 %v100, %v695
  %v697 = vpop.f32.mrf.mxu0
  %v698 = vadd.f32 %v100, %v697
  %699 = vmatmul.bf16.gmra.mxu0 %v350
  %v700 = vpop.f32.mrf.mxu0
  %v701 = vadd.f32 %v100, %v700
  %v702 = vpop.f32.mrf.mxu0
  %v703 = vadd.f32 %v100, %v702
  %704 = vmatmul.bf16.gmra.mxu0 %v352
  %v705 = vpop.f32.mrf.mxu0
  %v706 = vadd.f32 %v100, %v705
  %v707 = vpop.f32.mrf.mxu0
  %v708 = vadd.f32 %v100, %v707
  %709 = vmatmul.bf16.gmra.mxu0 %v354
  %v710 = vpop.f32.mrf.mxu0
  %v711 = vadd.f32 %v100, %v710
  %v712 = vpop.f32.mrf.mxu0
  %v713 = vadd.f32 %v100, %v712
  %714 = vmatmul.bf16.gmra.mxu0 %v356
  %v715 = vpop.f32.mrf.mxu0
  %v716 = vadd.f32 %v100, %v715
  %v717 = vpop.f32.mrf.mxu0
  %v718 = vadd.f32 %v100, %v717
  %719 = vdwg.mxu0
  %720 = vmatpush.bf16.msra.mxu0 0
  %721 = vmatpush.bf16.msra.mxu0 0
  %722 = vmatpush.bf16.msra.mxu0 0
  %723 = vmatpush.bf16.msra.mxu0 0
  %724 = vmatpush.bf16.msra.mxu0 0
  %725 = vmatpush.bf16.msra.mxu0 0
  %726 = vmatpush.bf16.msra.mxu0 %v549
  %727 = vmatpush.bf16.msra.mxu0 %v436
  %728 = vmatmul.bf16.gmra.mxu0 %v449
  %v729 = vpop.f32.mrf.mxu0
  %v730 = vadd.f32 %v561, %v729
  %v731 = vpop.f32.mrf.mxu0
  %v732 = vadd.f32 %v563, %v731
  %733 = vmatmul.bf16.gmra.mxu0 %v452
  %v734 = vpop.f32.mrf.mxu0
  %v735 = vadd.f32 %v566, %v734
  %v736 = vpop.f32.mrf.mxu0
  %v737 = vadd.f32 %v568, %v736
  %738 = vmatmul.bf16.gmra.mxu0 %v455
  %v739 = vpop.f32.mrf.mxu0
  %v740 = vadd.f32 %v571, %v739
  %v741 = vpop.f32.mrf.mxu0
  %v742 = vadd.f32 %v573, %v741
  %743 = vmatmul.bf16.gmra.mxu0 %v458
  %v744 = vpop.f32.mrf.mxu0
  %v745 = vadd.f32 %v576, %v744
  %v746 = vpop.f32.mrf.mxu0
  %v747 = vadd.f32 %v578, %v746
  %748 = vmatmul.bf16.gmra.mxu0 %v461
  %v749 = vpop.f32.mrf.mxu0
  %v750 = vadd.f32 %v581, %v749
  %v751 = vpop.f32.mrf.mxu0
  %v752 = vadd.f32 %v583, %v751
  %753 = vmatmul.bf16.gmra.mxu0 %v464
  %v754 = vpop.f32.mrf.mxu0
  %v755 = vadd.f32 %v586, %v754
  %v756 = vpop.f32.mrf.mxu0
  %v757 = vadd.f32 %v588, %v756
  %758 = vmatmul.bf16.gmra.mxu0 %v467
  %v759 = vpop.f32.mrf.mxu0
  %v760 = vadd.f32 %v591, %v759
  %v761 = vpop.f32.mrf.mxu0
  %v762 = vadd.f32 %v593, %v761
  %763 = vmatmul.bf16.gmra.mxu0 %v470
  %v764 = vpop.f32.mrf.mxu0
  %v765 = vadd.f32 %v596, %v764
  %v766 = vpop.f32.mrf.mxu0
  %v767 = vadd.f32 %v598, %v766
  %768 = vmatmul.bf16.gmra.mxu0 %v473
  %v769 = vpop.f32.mrf.mxu0
  %v770 = vadd.f32 %v601, %v769
  %v771 = vpop.f32.mrf.mxu0
  %v772 = vadd.f32 %v603, %v771
  %773 = vmatmul.bf16.gmra.mxu0 %v476
  %v774 = vpop.f32.mrf.mxu0
  %v775 = vadd.f32 %v606, %v774
  %v776 = vpop.f32.mrf.mxu0
  %v777 = vadd.f32 %v608, %v776
  %778 = vmatmul.bf16.gmra.mxu0 %v479
  %v779 = vpop.f32.mrf.mxu0
  %v780 = vadd.f32 %v611, %v779
  %v781 = vpop.f32.mrf.mxu0
  %v782 = vadd.f32 %v613, %v781
  %783 = vmatmul.bf16.gmra.mxu0 %v482
  %v784 = vpop.f32.mrf.mxu0
  %v785 = vadd.f32 %v616, %v784
  %v786 = vpop.f32.mrf.mxu0
  %v787 = vadd.f32 %v618, %v786
  %788 = vmatmul.bf16.gmra.mxu0 %v485
  %v789 = vpop.f32.mrf.mxu0
  %v790 = vadd.f32 %v621, %v789
  %v791 = vpop.f32.mrf.mxu0
  %v792 = vadd.f32 %v623, %v791
  %793 = vmatmul.bf16.gmra.mxu0 %v488
  %v794 = vpop.f32.mrf.mxu0
  %v795 = vadd.f32 %v626, %v794
  %v796 = vpop.f32.mrf.mxu0
  %v797 = vadd.f32 %v628, %v796
  %798 = vmatmul.bf16.gmra.mxu0 %v491
  %v799 = vpop.f32.mrf.mxu0
  %v800 = vadd.f32 %v631, %v799
  %v801 = vpop.f32.mrf.mxu0
  %v802 = vadd.f32 %v633, %v801
  %803 = vmatmul.bf16.gmra.mxu0 %v494
  %v804 = vpop.f32.mrf.mxu0
  %v805 = vadd.f32 %v636, %v804
  %v806 = vpop.f32.mrf.mxu0
  %v807 = vadd.f32 %v638, %v806
  %808 = vmatmul.bf16.gmra.mxu0 %v497
  %v809 = vpop.f32.mrf.mxu0
  %v810 = vadd.f32 %v641, %v809
  %v811 = vpop.f32.mrf.mxu0
  %v812 = vadd.f32 %v643, %v811
  %813 = vmatmul.bf16.gmra.mxu0 %v500
  %v814 = vpop.f32.mrf.mxu0
  %v815 = vadd.f32 %v646, %v814
  %v816 = vpop.f32.mrf.mxu0
  %v817 = vadd.f32 %v648, %v816
  %818 = vmatmul.bf16.gmra.mxu0 %v503
  %v819 = vpop.f32.mrf.mxu0
  %v820 = vadd.f32 %v651, %v819
  %v821 = vpop.f32.mrf.mxu0
  %v822 = vadd.f32 %v653, %v821
  %823 = vmatmul.bf16.gmra.mxu0 %v506
  %v824 = vpop.f32.mrf.mxu0
  %v825 = vadd.f32 %v656, %v824
  %v826 = vpop.f32.mrf.mxu0
  %v827 = vadd.f32 %v658, %v826
  %828 = vmatmul.bf16.gmra.mxu0 %v509
  %v829 = vpop.f32.mrf.mxu0
  %v830 = vadd.f32 %v661, %v829
  %v831 = vpop.f32.mrf.mxu0
  %v832 = vadd.f32 %v663, %v831
  %833 = vmatmul.bf16.gmra.mxu0 %v512
  %v834 = vpop.f32.mrf.mxu0
  %v835 = vadd.f32 %v666, %v834
  %v836 = vpop.f32.mrf.mxu0
  %v837 = vadd.f32 %v668, %v836
  %838 = vmatmul.bf16.gmra.mxu0 %v515
  %v839 = vpop.f32.mrf.mxu0
  %v840 = vadd.f32 %v671, %v839
  %v841 = vpop.f32.mrf.mxu0
  %v842 = vadd.f32 %v673, %v841
  %843 = vmatmul.bf16.gmra.mxu0 %v518
  %v844 = vpop.f32.mrf.mxu0
  %v845 = vadd.f32 %v676, %v844
  %v846 = vpop.f32.mrf.mxu0
  %v847 = vadd.f32 %v678, %v846
  %848 = vmatmul.bf16.gmra.mxu0 %v521
  %v849 = vpop.f32.mrf.mxu0
  %v850 = vadd.f32 %v681, %v849
  %v851 = vpop.f32.mrf.mxu0
  %v852 = vadd.f32 %v683, %v851
  %853 = vmatmul.bf16.gmra.mxu0 %v524
  %v854 = vpop.f32.mrf.mxu0
  %v855 = vadd.f32 %v686, %v854
  %v856 = vpop.f32.mrf.mxu0
  %v857 = vadd.f32 %v688, %v856
  %858 = vmatmul.bf16.gmra.mxu0 %v527
  %v859 = vpop.f32.mrf.mxu0
  %v860 = vadd.f32 %v691, %v859
  %v861 = vpop.f32.mrf.mxu0
  %v862 = vadd.f32 %v693, %v861
  %863 = vmatmul.bf16.gmra.mxu0 %v530
  %v864 = vpop.f32.mrf.mxu0
  %v865 = vadd.f32 %v696, %v864
  %v866 = vpop.f32.mrf.mxu0
  %v867 = vadd.f32 %v698, %v866
  %868 = vmatmul.bf16.gmra.mxu0 %v533
  %v869 = vpop.f32.mrf.mxu0
  %v870 = vadd.f32 %v701, %v869
  %v871 = vpop.f32.mrf.mxu0
  %v872 = vadd.f32 %v703, %v871
  %873 = vmatmul.bf16.gmra.mxu0 %v536
  %v874 = vpop.f32.mrf.mxu0
  %v875 = vadd.f32 %v706, %v874
  %v876 = vpop.f32.mrf.mxu0
  %v877 = vadd.f32 %v708, %v876
  %878 = vmatmul.bf16.gmra.mxu0 %v539
  %v879 = vpop.f32.mrf.mxu0
  %v880 = vadd.f32 %v711, %v879
  %v881 = vpop.f32.mrf.mxu0
  %v882 = vadd.f32 %v713, %v881
  %883 = vmatmul.bf16.gmra.mxu0 %v542
  %v884 = vpop.f32.mrf.mxu0
  %v885 = vadd.f32 %v716, %v884
  %v886 = vpop.f32.mrf.mxu0
  %v887 = vadd.f32 %v718, %v886
  %888 = vdwg.mxu0
  %v889 = vmax.f32 %v730, 0.0
  %v890 = vmax.f32 %v732, 0.0
  %v891 = vmax.f32 %v735, 0.0
  %v892 = vmax.f32 %v737, 0.0
  %v893 = vmax.f32 %v740, 0.0
  %v894 = vmax.f32 %v742, 0.0
  %v895 = vmax.f32 %v745, 0.0
  %v896 = vmax.f32 %v747, 0.0
  %v897 = vmax.f32 %v750, 0.0
  %v898 = vmax.f32 %v752, 0.0
  %v899 = vmax.f32 %v755, 0.0
  %v900 = vmax.f32 %v757, 0.0
  %v901 = vmax.f32 %v760, 0.0
  %v902 = vmax.f32 %v762, 0.0
  %v903 = vmax.f32 %v765, 0.0
  %v904 = vmax.f32 %v767, 0.0
  %v905 = vmax.f32 %v770, 0.0
  %v906 = vmax.f32 %v772, 0.0
  %v907 = vmax.f32 %v775, 0.0
  %v908 = vmax.f32 %v777, 0.0
  %v909 = vmax.f32 %v780, 0.0
  %v910 = vmax.f32 %v782, 0.0
  %v911 = vmax.f32 %v785, 0.0
  %v912 = vmax.f32 %v787, 0.0
  %v913 = vmax.f32 %v790, 0.0
  %v914 = vmax.f32 %v792, 0.0
  %v915 = vmax.f32 %v795, 0.0
  %v916 = vmax.f32 %v797, 0.0
  %v917 = vmax.f32 %v800, 0.0
  %v918 = vmax.f32 %v802, 0.0
  %v919 = vmax.f32 %v805, 0.0
  %v920 = vmax.f32 %v807, 0.0
  %v921 = vmax.f32 %v810, 0.0
  %v922 = vmax.f32 %v812, 0.0
  %v923 = vmax.f32 %v815, 0.0
  %v924 = vmax.f32 %v817, 0.0
  %v925 = vmax.f32 %v820, 0.0
  %v926 = vmax.f32 %v822, 0.0
  %v927 = vmax.f32 %v825, 0.0
  %v928 = vmax.f32 %v827, 0.0
  %v929 = vmax.f32 %v830, 0.0
  %v930 = vmax.f32 %v832, 0.0
  %v931 = vmax.f32 %v835, 0.0
  %v932 = vmax.f32 %v837, 0.0
  %v933 = vmax.f32 %v840, 0.0
  %v934 = vmax.f32 %v842, 0.0
  %v935 = vmax.f32 %v845, 0.0
  %v936 = vmax.f32 %v847, 0.0
  %v937 = vmax.f32 %v850, 0.0
  %v938 = vmax.f32 %v852, 0.0
  %v939 = vmax.f32 %v855, 0.0
  %v940 = vmax.f32 %v857, 0.0
  %v941 = vmax.f32 %v860, 0.0
  %v942 = vmax.f32 %v862, 0.0
  %v943 = vmax.f32 %v865, 0.0
  %v944 = vmax.f32 %v867, 0.0
  %v945 = vmax.f32 %v870, 0.0
  %v946 = vmax.f32 %v872, 0.0
  %v947 = vmax.f32 %v875, 0.0
  %v948 = vmax.f32 %v877, 0.0
  %v949 = vmax.f32 %v880, 0.0
  %v950 = vmax.f32 %v882, 0.0
  %v951 = vmax.f32 %v885, 0.0
  %v952 = vmax.f32 %v887, 0.0
  %vm953 = vcmask 523264
  %954 = vst.msk [vmem:[%s3] sm:$0xff] %vm953, %v889
  %955 = vst.msk [vmem:[%s3 + $0x8] sm:$0xff] %vm953, %v890
  %956 = vst.msk [vmem:[%s3 + $0x10] sm:$0xff] %vm953, %v891
  %957 = vst.msk [vmem:[%s3 + $0x18] sm:$0xff] %vm953, %v892
  %958 = vst.msk [vmem:[%s3 + $0x20] sm:$0xff] %vm953, %v893
  %959 = vst.msk [vmem:[%s3 + $0x28] sm:$0xff] %vm953, %v894
  %960 = vst.msk [vmem:[%s3 + $0x30] sm:$0xff] %vm953, %v895
  %961 = vst.msk [vmem:[%s3 + $0x38] sm:$0xff] %vm953, %v896
  %962 = vst.msk [vmem:[%s3 + $0x40] sm:$0xff] %vm953, %v897
  %963 = vst.msk [vmem:[%s3 + $0x48] sm:$0xff] %vm953, %v898
  %964 = vst.msk [vmem:[%s3 + $0x50] sm:$0xff] %vm953, %v899
  %965 = vst.msk [vmem:[%s3 + $0x58] sm:$0xff] %vm953, %v900
  %966 = vst.msk [vmem:[%s3 + $0x60] sm:$0xff] %vm953, %v901
  %967 = vst.msk [vmem:[%s3 + $0x68] sm:$0xff] %vm953, %v902
  %968 = vst.msk [vmem:[%s3 + $0x70] sm:$0xff] %vm953, %v903
  %969 = vst.msk [vmem:[%s3 + $0x78] sm:$0xff] %vm953, %v904
  %970 = vst.msk [vmem:[%s3 + $0x80] sm:$0xff] %vm953, %v905
  %971 = vst.msk [vmem:[%s3 + $0x88] sm:$0xff] %vm953, %v906
  %972 = vst.msk [vmem:[%s3 + $0x90] sm:$0xff] %vm953, %v907
  %973 = vst.msk [vmem:[%s3 + $0x98] sm:$0xff] %vm953, %v908
  %974 = vst.msk [vmem:[%s3 + $0xa0] sm:$0xff] %vm953, %v909
  %975 = vst.msk [vmem:[%s3 + $0xa8] sm:$0xff] %vm953, %v910
  %976 = vst.msk [vmem:[%s3 + $0xb0] sm:$0xff] %vm953, %v911
  %977 = vst.msk [vmem:[%s3 + $0xb8] sm:$0xff] %vm953, %v912
  %978 = vst.msk [vmem:[%s3 + $0xc0] sm:$0xff] %vm953, %v913
  %979 = vst.msk [vmem:[%s3 + $0xc8] sm:$0xff] %vm953, %v914
  %980 = vst.msk [vmem:[%s3 + $0xd0] sm:$0xff] %vm953, %v915
  %981 = vst.msk [vmem:[%s3 + $0xd8] sm:$0xff] %vm953, %v916
  %982 = vst.msk [vmem:[%s3 + $0xe0] sm:$0xff] %vm953, %v917
  %983 = vst.msk [vmem:[%s3 + $0xe8] sm:$0xff] %vm953, %v918
  %984 = vst.msk [vmem:[%s3 + $0xf0] sm:$0xff] %vm953, %v919
  %985 = vst.msk [vmem:[%s3 + $0xf8] sm:$0xff] %vm953, %v920
  %986 = vst.msk [vmem:[%s3 + $0x100] sm:$0xff] %vm953, %v921
  %987 = vst.msk [vmem:[%s3 + $0x108] sm:$0xff] %vm953, %v922
  %988 = vst.msk [vmem:[%s3 + $0x110] sm:$0xff] %vm953, %v923
  %989 = vst.msk [vmem:[%s3 + $0x118] sm:$0xff] %vm953, %v924
  %990 = vst.msk [vmem:[%s3 + $0x120] sm:$0xff] %vm953, %v925
  %991 = vst.msk [vmem:[%s3 + $0x128] sm:$0xff] %vm953, %v926
  %992 = vst.msk [vmem:[%s3 + $0x130] sm:$0xff] %vm953, %v927
  %993 = vst.msk [vmem:[%s3 + $0x138] sm:$0xff] %vm953, %v928
  %994 = vst.msk [vmem:[%s3 + $0x140] sm:$0xff] %vm953, %v929
  %995 = vst.msk [vmem:[%s3 + $0x148] sm:$0xff] %vm953, %v930
  %996 = vst.msk [vmem:[%s3 + $0x150] sm:$0xff] %vm953, %v931
  %997 = vst.msk [vmem:[%s3 + $0x158] sm:$0xff] %vm953, %v932
  %998 = vst.msk [vmem:[%s3 + $0x160] sm:$0xff] %vm953, %v933
  %999 = vst.msk [vmem:[%s3 + $0x168] sm:$0xff] %vm953, %v934
  %1000 = vst.msk [vmem:[%s3 + $0x170] sm:$0xff] %vm953, %v935
  %1001 = vst.msk [vmem:[%s3 + $0x178] sm:$0xff] %vm953, %v936
  %1002 = vst.msk [vmem:[%s3 + $0x180] sm:$0xff] %vm953, %v937
  %1003 = vst.msk [vmem:[%s3 + $0x188] sm:$0xff] %vm953, %v938
  %1004 = vst.msk [vmem:[%s3 + $0x190] sm:$0xff] %vm953, %v939
  %1005 = vst.msk [vmem:[%s3 + $0x198] sm:$0xff] %vm953, %v940
  %1006 = vst.msk [vmem:[%s3 + $0x1a0] sm:$0xff] %vm953, %v941
  %1007 = vst.msk [vmem:[%s3 + $0x1a8] sm:$0xff] %vm953, %v942
  %1008 = vst.msk [vmem:[%s3 + $0x1b0] sm:$0xff] %vm953, %v943
  %1009 = vst.msk [vmem:[%s3 + $0x1b8] sm:$0xff] %vm953, %v944
  %1010 = vst.msk [vmem:[%s3 + $0x1c0] sm:$0xff] %vm953, %v945
  %1011 = vst.msk [vmem:[%s3 + $0x1c8] sm:$0xff] %vm953, %v946
  %1012 = vst.msk [vmem:[%s3 + $0x1d0] sm:$0xff] %vm953, %v947
  %1013 = vst.msk [vmem:[%s3 + $0x1d8] sm:$0xff] %vm953, %v948
  %1014 = vst.msk [vmem:[%s3 + $0x1e0] sm:$0xff] %vm953, %v949
  %1015 = vst.msk [vmem:[%s3 + $0x1e8] sm:$0xff] %vm953, %v950
  %1016 = vst.msk [vmem:[%s3 + $0x1f0] sm:$0xff] %vm953, %v951
  %1017 = vst.msk [vmem:[%s3 + $0x1f8] sm:$0xff] %vm953, %v952
  // Predicated region
  $region14: #{tpu_custom_call.1} parent=0 // pred_check
    _
  $region15: #{tpu_custom_call.1} parent=0 // pred_check_branch
    %1019 = sbr.rel (0) target = $region17
  $region16: #{tpu_custom_call.1} parent=0 // pred_region
    _
  $region17: #{tpu_custom_call.1} parent=0 // pred_fallthru
    _
  // Predicated region
  $region18: #{tpu_custom_call.1} parent=0 // pred_check
    _
  $region19: #{tpu_custom_call.1} parent=0 // pred_check_branch
    %1021 = sbr.rel (0) target = $region21
  $region20: #{tpu_custom_call.1} parent=0 // pred_region
    _
  $region21: #{tpu_custom_call.1} parent=0 // pred_fallthru
    _

</llo_original>
